<compile_context>
chip_gen: v7x
topology: tpu7x:2x2x1
jax: 0.10.0
libtpu: 0.0.40
codegen_flags: <defaults>
</compile_context>

<pallas_src>
import functools

import jax
import jax.numpy as jnp
from jax.experimental import pallas as pl
from jax.experimental.pallas import tpu as pltpu

WIDTH = 3
N_LAYERS = 2
HIDDEN = 32
BATCH = 2
SEQ = 8
LN_EPS = 1e-6


def _round8(n):
    return ((n + 7) // 8) * 8


def _layout(n_layers, seq, lanes):
    """Row layout of the single packed parameter slab (all offsets 8-aligned)."""
    assert lanes % 8 == 0
    mf_row = lanes                      # Sseg occupies rows [0, lanes)
    goff = lanes + 8                    # start of per-layer blocks
    s_pad = _round8(seq)
    pad_off = 2 * lanes                 # after W1 (lanes rows) and W2 (lanes rows)
    lng_off = pad_off + s_pad
    lnb_off = lng_off + 8
    b1_off = lnb_off + 8
    b2_off = b1_off + 8
    lrows = b2_off + 8
    total = goff + n_layers * lrows
    return dict(mf_row=mf_row, goff=goff, pad_off=pad_off, lng_off=lng_off,
                lnb_off=lnb_off, b1_off=b1_off, b2_off=b2_off, lrows=lrows,
                total=total)


# ----------------------------- Pallas kernel --------------------------------
def _fused_lbl_kernel(x_ref, pbuf_ref, tmat_ref, out_ref, *,
                      n_layers, seq, hidden, lanes, eps):
    """Fully fused LBLResNetBiLm forward (both directions, all layers).

    x_ref    : (S, lanes)            VMEM  lanes = batch*2*hidden, lane=(b,d,h)
    pbuf_ref : (rows, lanes)         VMEM  single packed parameter slab
    tmat_ref : (2*n_layers, S, S)    VMEM  banded-Toeplitz tap matrices [l, d]
    out_ref  : (n_layers*S, lanes)   VMEM  lane-dense packed output
    """
    S, H = seq, hidden
    lay = _layout(n_layers, seq, lanes)
    inv_h = 1.0 / H
    inv_hm1 = 1.0 / (H - 1)

    m_f = pbuf_ref[lay["mf_row"]:lay["mf_row"] + 1, :]          # (1, lanes)
    x = x_ref[...]                                              # (S, lanes)

    for l in range(n_layers):                                   # static unroll
        base = lay["goff"] + l * lay["lrows"]

        # ---- windowed tap sum: Toeplitz matmul + precomputed pad bias ------
        t_f = tmat_ref[2 * l]                                   # (S, S)
        t_b = tmat_ref[2 * l + 1]                               # (S, S)
        pad_bias = pbuf_ref[base + lay["pad_off"]:base + lay["pad_off"] + S, :]
        a_f = jnp.dot(t_f, x, preferred_element_type=jnp.float32)
        a_b = jnp.dot(t_b, x, preferred_element_type=jnp.float32)
        acc = a_b + m_f * (a_f - a_b) + pad_bias                # (S, lanes)

        # ---- LayerNorm (per 32-lane group) via group-sum matmul ------------
        sseg = pbuf_ref[0:lanes, :]                             # (lanes, lanes)
        g = pbuf_ref[base + lay["lng_off"]:base + lay["lng_off"] + 1, :]
        b_ln = pbuf_ref[base + lay["lnb_off"]:base + lay["lnb_off"] + 1, :]
        mean = jnp.dot(acc, sseg, preferred_element_type=jnp.float32) * inv_h
        diff = acc - mean
        var = jnp.dot(diff * diff, sseg,
                      preferred_element_type=jnp.float32) * inv_hm1
        # TODO(synk): switch to approx=True once the 1e-4 tolerance is re-verified.
        inv_std = pl.reciprocal(jnp.sqrt(var) + eps)
        z = g * diff * inv_std + b_ln

        # ---- PositionwiseFeedForward with block-diagonal weights -----------
        w1 = pbuf_ref[base:base + lanes, :]
        b1 = pbuf_ref[base + lay["b1_off"]:base + lay["b1_off"] + 1, :]
        hdn = jnp.maximum(
            jnp.dot(z, w1, preferred_element_type=jnp.float32) + b1, 0.0)
        w2 = pbuf_ref[base + lanes:base + 2 * lanes, :]
        b2 = pbuf_ref[base + lay["b2_off"]:base + lay["b2_off"] + 1, :]
        ffn = jnp.dot(hdn, w2, preferred_element_type=jnp.float32) + b2

        # ---- SublayerConnection residual; feeds the next layer -------------
        x = acc + ffn                                           # (S, lanes)
        out_ref[l * S:(l + 1) * S, :] = x.astype(out_ref.dtype)


# ------------------------------ parameter packing ----------------------------
def pack_params(params, x_shape, *, width, n_layers):
    """Precompute Toeplitz tap matrices, pad biases, block-diagonal FFN weights,
    LN/bias lane vectors, lane masks and the group-sum matrix, packed into one
    (rows, lanes) slab + one tiny (2L, S, S) tap-matrix array."""
    B, S, H = x_shape
    lanes = B * 2 * H
    lay = _layout(n_layers, S, lanes)

    def dir_vec(v_f, v_b):                                       # (lanes,)
        vv = jnp.stack([v_f, v_b], axis=0).astype(jnp.float32)   # (2, H)
        return jnp.broadcast_to(vv[None], (B, 2, H)).reshape(lanes)

    def block_diag_dir(w_f, w_b):                                # (lanes, lanes)
        out = jnp.zeros((lanes, lanes), jnp.float32)
        for b in range(B):
            for d, w in enumerate((w_f, w_b)):
                g = b * 2 + d
                out = out.at[g * H:(g + 1) * H, g * H:(g + 1) * H].set(
                    w.astype(jnp.float32))
        return out

    groups = jnp.arange(lanes) // H                              # lane group (b,d)
    sseg = (groups[:, None] == groups[None, :]).astype(jnp.float32)
    m_f = ((groups % 2) == 0).astype(jnp.float32).reshape(1, lanes)

    s_idx = jnp.arange(S)[:, None]
    j_idx = jnp.arange(S)[None, :]

    pbuf = jnp.zeros((lay["total"], lanes), jnp.float32)
    pbuf = pbuf.at[0:lanes, :].set(sseg)
    pbuf = pbuf.at[lay["mf_row"]:lay["mf_row"] + 1, :].set(m_f)

    tmats = []
    for l in range(n_layers):
        p = params[l]
        base = lay["goff"] + l * lay["lrows"]
        pbuf = pbuf.at[base:base + lanes].set(
            block_diag_dir(p["fwd_w1"], p["bwd_w1"]))
        pbuf = pbuf.at[base + lanes:base + 2 * lanes].set(
            block_diag_dir(p["fwd_w2"], p["bwd_w2"]))

        tf = p["fwd_taps"].astype(jnp.float32)
        tb = p["bwd_taps"].astype(jnp.float32)
        # forward: acc[s] gets taps_f[width + j - s] * stream[j], j in [s-width, s]
        k_f = width + j_idx - s_idx
        t_f = jnp.where((k_f >= 0) & (k_f <= width), tf[jnp.clip(k_f, 0, width)], 0.0)
        # backward: acc[s] gets taps_b[j - s] * stream[j], j in [s, s+width]
        k_b = j_idx - s_idx
        t_b = jnp.where((k_b >= 0) & (k_b <= width), tb[jnp.clip(k_b, 0, width)], 0.0)
        tmats += [t_f.astype(jnp.float32), t_b.astype(jnp.float32)]

        # data-independent pad contributions to the windowed sum
        pb_f = jnp.zeros((S, H), jnp.float32)
        for s in range(min(S, width)):
            for w in range(width - s):                            # s + w < width
                pb_f = pb_f.at[s].add(tf[w] * p["fwd_pad"][s + w])
        pb_b = jnp.zeros((S, H), jnp.float32)
        for s in range(max(0, S - width), S):
            for w in range(S - s, width + 1):                     # s + w >= S
                pb_b = pb_b.at[s].add(tb[w] * p["bwd_pad"][s + w - S])
        pbd = jnp.stack([pb_f, pb_b], axis=1)                     # (S, 2, H)
        pad_bias = jnp.broadcast_to(pbd[:, None], (S, B, 2, H)).reshape(S, lanes)
        pbuf = pbuf.at[base + lay["pad_off"]:base + lay["pad_off"] + S].set(pad_bias)

        pbuf = pbuf.at[base + lay["lng_off"]].set(dir_vec(p["fwd_ln_g"], p["bwd_ln_g"]))
        pbuf = pbuf.at[base + lay["lnb_off"]].set(dir_vec(p["fwd_ln_b"], p["bwd_ln_b"]))
        pbuf = pbuf.at[base + lay["b1_off"]].set(dir_vec(p["fwd_b1"], p["bwd_b1"]))
        pbuf = pbuf.at[base + lay["b2_off"]].set(dir_vec(p["fwd_b2"], p["bwd_b2"]))

    return dict(pbuf=pbuf, tmat=jnp.stack(tmats, axis=0))


# ------------------------------ JAX wrapper ----------------------------------
def lbl_resnet_bilm_forward(x, packed, *, n_layers):
    """x: (B, S, H) -> (n_layers, B, S, 2H); one fused grid-less pallas_call."""
    B, S, H = x.shape
    lanes = B * 2 * H

    # (B,S,H) -> (S, lanes) with lane = b*2H + d*H + h (fwd/bwd start identical)
    x_packed = jnp.broadcast_to(
        jnp.transpose(x, (1, 0, 2))[:, :, None, :], (S, B, 2, H)
    ).reshape(S, lanes).astype(jnp.float32)

    kern = functools.partial(_fused_lbl_kernel, n_layers=n_layers, seq=S,
                             hidden=H, lanes=lanes, eps=LN_EPS)
    vmem = pl.BlockSpec(memory_space=pltpu.MemorySpace.VMEM)

    out = pl.pallas_call(
        kern,
        out_shape=jax.ShapeDtypeStruct((n_layers * S, lanes), jnp.float32),
        in_specs=[vmem, vmem, vmem],
        out_specs=vmem,
    )(x_packed, packed["pbuf"], packed["tmat"])

    # (L*S, lanes) -> (L, B, S, 2H): matches torch.stack over layers of
    # torch.cat([forward, backward], dim=-1).
    out = out.reshape(n_layers, S, B, 2, H)
    return jnp.transpose(out, (0, 2, 1, 3, 4)).reshape(n_layers, B, S, 2 * H)


# ---------------------------- pure-JAX reference ----------------------------
def _ref_direction_layer(x_padded, taps, ln_g, ln_b, w1, b1, w2, b2, *, width):
    B, SP, H = x_padded.shape
    S = SP - width
    acc = sum(taps[w] * x_padded[:, w:w + S, :] for w in range(width + 1))
    mean = acc.mean(-1, keepdims=True)
    diff = acc - mean
    std = jnp.sqrt((diff * diff).sum(-1, keepdims=True) / (H - 1))
    z = ln_g * diff / (std + LN_EPS) + ln_b
    h = jnp.maximum(z @ w1 + b1, 0.0)
    return acc + h @ w2 + b2


def lbl_resnet_bilm_reference(x, params, *, width, n_layers):
    B, S, H = x.shape
    fwd, bwd = x, x
    outs = []
    for i in range(n_layers):
        p = params[i]
        fwd_pad = jnp.broadcast_to(p["fwd_pad"][None], (B, width, H))
        bwd_pad = jnp.broadcast_to(p["bwd_pad"][None], (B, width, H))
        fwd_in = jnp.concatenate([fwd_pad, fwd], axis=1)
        bwd_in = jnp.concatenate([bwd, bwd_pad], axis=1)
        fwd = _ref_direction_layer(fwd_in, p["fwd_taps"], p["fwd_ln_g"], p["fwd_ln_b"],
                                   p["fwd_w1"], p["fwd_b1"], p["fwd_w2"], p["fwd_b2"],
                                   width=width)
        bwd = _ref_direction_layer(bwd_in, p["bwd_taps"], p["bwd_ln_g"], p["bwd_ln_b"],
                                   p["bwd_w1"], p["bwd_b1"], p["bwd_w2"], p["bwd_b2"],
                                   width=width)
        outs.append(jnp.concatenate([fwd, bwd], axis=-1))
    return jnp.stack(outs, axis=0)


# ------------------------------ parameter init -------------------------------
def init_params(key, n_layers, width, H):
    params = []
    for i in range(n_layers):
        ks = jax.random.split(jax.random.fold_in(key, i), 12)
        inv_sqrt_h = 1.0 / jnp.sqrt(jnp.float32(H))
        params.append(dict(
            fwd_pad=jax.random.normal(ks[0], (width, H), jnp.float32) * inv_sqrt_h,
            bwd_pad=jax.random.normal(ks[1], (width, H), jnp.float32) * inv_sqrt_h,
            fwd_taps=jax.random.normal(ks[2], (width + 1,), jnp.float32),
            bwd_taps=jax.random.normal(ks[3], (width + 1,), jnp.float32),
            # FFN weights stored as (in, out); torch.nn.Linear uses (out, in).T.
            fwd_w1=jax.random.normal(ks[4], (H, H), jnp.float32) * 0.1,
            fwd_b1=jax.random.normal(ks[5], (H,), jnp.float32) * 0.1,
            fwd_w2=jax.random.normal(ks[6], (H, H), jnp.float32) * 0.1,
            fwd_b2=jax.random.normal(ks[7], (H,), jnp.float32) * 0.1,
            bwd_w1=jax.random.normal(ks[8], (H, H), jnp.float32) * 0.1,
            bwd_b1=jax.random.normal(ks[9], (H,), jnp.float32) * 0.1,
            bwd_w2=jax.random.normal(ks[10], (H, H), jnp.float32) * 0.1,
            bwd_b2=jax.random.normal(ks[11], (H,), jnp.float32) * 0.1,
            fwd_ln_g=jnp.ones((H,), jnp.float32),
            fwd_ln_b=jnp.zeros((H,), jnp.float32),
            bwd_ln_g=jnp.ones((H,), jnp.float32),
            bwd_ln_b=jnp.zeros((H,), jnp.float32),
        ))
    return params


if __name__ == "__main__":
    key = jax.random.PRNGKey(0)
    k_x, k_p = jax.random.split(key)

    x = jax.random.normal(k_x, (BATCH, SEQ, HIDDEN), jnp.float32)
    params = init_params(k_p, N_LAYERS, WIDTH, HIDDEN)
    packed = pack_params(params, x.shape, width=WIDTH, n_layers=N_LAYERS)

    out = lbl_resnet_bilm_forward(x, packed, n_layers=N_LAYERS)
    out = jax.block_until_ready(out)

    ref = jax.block_until_ready(
        lbl_resnet_bilm_reference(x, params, width=WIDTH, n_layers=N_LAYERS))

    assert out.shape == (N_LAYERS, BATCH, SEQ, 2 * HIDDEN), out.shape
    assert jnp.allclose(out, ref, atol=1e-4, rtol=1e-4), float(
        jnp.max(jnp.abs(out - ref)))

    print("KERNEL_OK")
</pallas_src>

<mosaic_0001>
module attributes {stable_mosaic.version = 11 : i64} {
  func.func @_fused_lbl_kernel(%arg0: memref<8x128xf32, #tpu.memory_space<vmem>>, %arg1: memref<728x128xf32, #tpu.memory_space<vmem>>, %arg2: memref<4x8x8xf32, #tpu.memory_space<vmem>>, %arg3: memref<16x128xf32, #tpu.memory_space<vmem>>) attributes {dimension_semantics = [], scalar_prefetch = 0 : i64, scratch_operands = 0 : i64, tpu.core_type = #tpu.core_type<tc>} {
    %c128 = arith.constant 128 : index
    %c0 = arith.constant 0 : index
    %0 = vector.load %arg1[%c128, %c0] : memref<728x128xf32, #tpu.memory_space<vmem>>, vector<1x128xf32>
    %c0_0 = arith.constant 0 : index
    %c0_1 = arith.constant 0 : index
    %1 = vector.load %arg0[%c0_0, %c0_1] : memref<8x128xf32, #tpu.memory_space<vmem>>, vector<8x128xf32>
    %c0_2 = arith.constant 0 : index
    %c0_3 = arith.constant 0 : index
    %c0_4 = arith.constant 0 : index
    %2 = vector.load %arg2[%c0_2, %c0_3, %c0_4] : memref<4x8x8xf32, #tpu.memory_space<vmem>>, vector<1x8x8xf32>
    %3 = vector.shape_cast %2 : vector<1x8x8xf32> to vector<8x8xf32>
    %c1 = arith.constant 1 : index
    %c0_5 = arith.constant 0 : index
    %c0_6 = arith.constant 0 : index
    %4 = vector.load %arg2[%c1, %c0_5, %c0_6] : memref<4x8x8xf32, #tpu.memory_space<vmem>>, vector<1x8x8xf32>
    %5 = vector.shape_cast %4 : vector<1x8x8xf32> to vector<8x8xf32>
    %c392 = arith.constant 392 : index
    %c0_7 = arith.constant 0 : index
    %6 = vector.load %arg1[%c392, %c0_7] : memref<728x128xf32, #tpu.memory_space<vmem>>, vector<8x128xf32>
    %cst = arith.constant dense<0.000000e+00> : vector<8x128xf32>
    %7 = tpu.matmul %3, %1, %cst {dimension_numbers = #tpu.dot_dimension_numbers<[1], [0], [0], [1], [0, 0, 1, 1], [], []>} : vector<8x8xf32>, vector<8x128xf32>, vector<8x128xf32> -> vector<8x128xf32>
    %cst_8 = arith.constant dense<0.000000e+00> : vector<8x128xf32>
    %8 = tpu.matmul %5, %1, %cst_8 {dimension_numbers = #tpu.dot_dimension_numbers<[1], [0], [0], [1], [0, 0, 1, 1], [], []>} : vector<8x8xf32>, vector<8x128xf32>, vector<8x128xf32> -> vector<8x128xf32>
    %9 = arith.subf %7, %8 : vector<8x128xf32>
    %10 = vector.broadcast %0 : vector<1x128xf32> to vector<8x128xf32>
    %11 = arith.mulf %10, %9 : vector<8x128xf32>
    %12 = arith.addf %8, %11 : vector<8x128xf32>
    %13 = arith.addf %12, %6 : vector<8x128xf32>
    %c0_9 = arith.constant 0 : index
    %c0_10 = arith.constant 0 : index
    %14 = vector.load %arg1[%c0_9, %c0_10] : memref<728x128xf32, #tpu.memory_space<vmem>>, vector<128x128xf32>
    %c400 = arith.constant 400 : index
    %c0_11 = arith.constant 0 : index
    %15 = vector.load %arg1[%c400, %c0_11] : memref<728x128xf32, #tpu.memory_space<vmem>>, vector<1x128xf32>
    %c408 = arith.constant 408 : index
    %c0_12 = arith.constant 0 : index
    %16 = vector.load %arg1[%c408, %c0_12] : memref<728x128xf32, #tpu.memory_space<vmem>>, vector<1x128xf32>
    %cst_13 = arith.constant dense<0.000000e+00> : vector<8x128xf32>
    %17 = tpu.matmul %13, %14, %cst_13 {dimension_numbers = #tpu.dot_dimension_numbers<[1], [0], [0], [1], [0, 0, 1, 1], [], []>} : vector<8x128xf32>, vector<128x128xf32>, vector<8x128xf32> -> vector<8x128xf32>
    %cst_14 = arith.constant 3.125000e-02 : f32
    %18 = vector.broadcast %cst_14 : f32 to vector<8x128xf32>
    %19 = arith.mulf %17, %18 : vector<8x128xf32>
    %20 = arith.subf %13, %19 : vector<8x128xf32>
    %21 = arith.mulf %20, %20 : vector<8x128xf32>
    %cst_15 = arith.constant dense<0.000000e+00> : vector<8x128xf32>
    %22 = tpu.matmul %21, %14, %cst_15 {dimension_numbers = #tpu.dot_dimension_numbers<[1], [0], [0], [1], [0, 0, 1, 1], [], []>} : vector<8x128xf32>, vector<128x128xf32>, vector<8x128xf32> -> vector<8x128xf32>
    %cst_16 = arith.constant 0.0322580636 : f32
    %23 = vector.broadcast %cst_16 : f32 to vector<8x128xf32>
    %24 = arith.mulf %22, %23 : vector<8x128xf32>
    %25 = math.sqrt %24 : vector<8x128xf32>
    %cst_17 = arith.constant 9.99999997E-7 : f32
    %26 = vector.broadcast %cst_17 : f32 to vector<8x128xf32>
    %27 = arith.addf %25, %26 : vector<8x128xf32>
    %28 = tpu.reciprocal %27 : vector<8x128xf32> -> vector<8x128xf32>
    %29 = vector.broadcast %15 : vector<1x128xf32> to vector<8x128xf32>
    %30 = arith.mulf %29, %20 : vector<8x128xf32>
    %31 = arith.mulf %30, %28 : vector<8x128xf32>
    %32 = vector.broadcast %16 : vector<1x128xf32> to vector<8x128xf32>
    %33 = arith.addf %31, %32 : vector<8x128xf32>
    %c136 = arith.constant 136 : index
    %c0_18 = arith.constant 0 : index
    %34 = vector.load %arg1[%c136, %c0_18] : memref<728x128xf32, #tpu.memory_space<vmem>>, vector<128x128xf32>
    %c416 = arith.constant 416 : index
    %c0_19 = arith.constant 0 : index
    %35 = vector.load %arg1[%c416, %c0_19] : memref<728x128xf32, #tpu.memory_space<vmem>>, vector<1x128xf32>
    %cst_20 = arith.constant dense<0.000000e+00> : vector<8x128xf32>
    %36 = tpu.matmul %33, %34, %cst_20 {dimension_numbers = #tpu.dot_dimension_numbers<[1], [0], [0], [1], [0, 0, 1, 1], [], []>} : vector<8x128xf32>, vector<128x128xf32>, vector<8x128xf32> -> vector<8x128xf32>
    %37 = vector.broadcast %35 : vector<1x128xf32> to vector<8x128xf32>
    %38 = arith.addf %36, %37 : vector<8x128xf32>
    %cst_21 = arith.constant 0.000000e+00 : f32
    %39 = vector.broadcast %cst_21 : f32 to vector<8x128xf32>
    %40 = arith.maximumf %38, %39 : vector<8x128xf32>
    %c264 = arith.constant 264 : index
    %c0_22 = arith.constant 0 : index
    %41 = vector.load %arg1[%c264, %c0_22] : memref<728x128xf32, #tpu.memory_space<vmem>>, vector<128x128xf32>
    %c424 = arith.constant 424 : index
    %c0_23 = arith.constant 0 : index
    %42 = vector.load %arg1[%c424, %c0_23] : memref<728x128xf32, #tpu.memory_space<vmem>>, vector<1x128xf32>
    %cst_24 = arith.constant dense<0.000000e+00> : vector<8x128xf32>
    %43 = tpu.matmul %40, %41, %cst_24 {dimension_numbers = #tpu.dot_dimension_numbers<[1], [0], [0], [1], [0, 0, 1, 1], [], []>} : vector<8x128xf32>, vector<128x128xf32>, vector<8x128xf32> -> vector<8x128xf32>
    %44 = vector.broadcast %42 : vector<1x128xf32> to vector<8x128xf32>
    %45 = arith.addf %43, %44 : vector<8x128xf32>
    %46 = arith.addf %13, %45 : vector<8x128xf32>
    %c0_25 = arith.constant 0 : index
    %c0_26 = arith.constant 0 : index
    %47 = vector.load %arg3[%c0_25, %c0_26] : memref<16x128xf32, #tpu.memory_space<vmem>>, vector<8x128xf32>
    tpu.vector_store %arg3[%c0_25, %c0_26], %46 {strides = array<i32>} : memref<16x128xf32, #tpu.memory_space<vmem>>, vector<8x128xf32>,
    %c2 = arith.constant 2 : index
    %c0_27 = arith.constant 0 : index
    %c0_28 = arith.constant 0 : index
    %48 = vector.load %arg2[%c2, %c0_27, %c0_28] : memref<4x8x8xf32, #tpu.memory_space<vmem>>, vector<1x8x8xf32>
    %49 = vector.shape_cast %48 : vector<1x8x8xf32> to vector<8x8xf32>
    %c3 = arith.constant 3 : index
    %c0_29 = arith.constant 0 : index
    %c0_30 = arith.constant 0 : index
    %50 = vector.load %arg2[%c3, %c0_29, %c0_30] : memref<4x8x8xf32, #tpu.memory_space<vmem>>, vector<1x8x8xf32>
    %51 = vector.shape_cast %50 : vector<1x8x8xf32> to vector<8x8xf32>
    %c688 = arith.constant 688 : index
    %c0_31 = arith.constant 0 : index
    %52 = vector.load %arg1[%c688, %c0_31] : memref<728x128xf32, #tpu.memory_space<vmem>>, vector<8x128xf32>
    %cst_32 = arith.constant dense<0.000000e+00> : vector<8x128xf32>
    %53 = tpu.matmul %49, %46, %cst_32 {dimension_numbers = #tpu.dot_dimension_numbers<[1], [0], [0], [1], [0, 0, 1, 1], [], []>} : vector<8x8xf32>, vector<8x128xf32>, vector<8x128xf32> -> vector<8x128xf32>
    %cst_33 = arith.constant dense<0.000000e+00> : vector<8x128xf32>
    %54 = tpu.matmul %51, %46, %cst_33 {dimension_numbers = #tpu.dot_dimension_numbers<[1], [0], [0], [1], [0, 0, 1, 1], [], []>} : vector<8x8xf32>, vector<8x128xf32>, vector<8x128xf32> -> vector<8x128xf32>
    %55 = arith.subf %53, %54 : vector<8x128xf32>
    %56 = vector.broadcast %0 : vector<1x128xf32> to vector<8x128xf32>
    %57 = arith.mulf %56, %55 : vector<8x128xf32>
    %58 = arith.addf %54, %57 : vector<8x128xf32>
    %59 = arith.addf %58, %52 : vector<8x128xf32>
    %c0_34 = arith.constant 0 : index
    %c0_35 = arith.constant 0 : index
    %60 = vector.load %arg1[%c0_34, %c0_35] : memref<728x128xf32, #tpu.memory_space<vmem>>, vector<128x128xf32>
    %c696 = arith.constant 696 : index
    %c0_36 = arith.constant 0 : index
    %61 = vector.load %arg1[%c696, %c0_36] : memref<728x128xf32, #tpu.memory_space<vmem>>, vector<1x128xf32>
    %c704 = arith.constant 704 : index
    %c0_37 = arith.constant 0 : index
    %62 = vector.load %arg1[%c704, %c0_37] : memref<728x128xf32, #tpu.memory_space<vmem>>, vector<1x128xf32>
    %cst_38 = arith.constant dense<0.000000e+00> : vector<8x128xf32>
    %63 = tpu.matmul %59, %60, %cst_38 {dimension_numbers = #tpu.dot_dimension_numbers<[1], [0], [0], [1], [0, 0, 1, 1], [], []>} : vector<8x128xf32>, vector<128x128xf32>, vector<8x128xf32> -> vector<8x128xf32>
    %cst_39 = arith.constant 3.125000e-02 : f32
    %64 = vector.broadcast %cst_39 : f32 to vector<8x128xf32>
    %65 = arith.mulf %63, %64 : vector<8x128xf32>
    %66 = arith.subf %59, %65 : vector<8x128xf32>
    %67 = arith.mulf %66, %66 : vector<8x128xf32>
    %cst_40 = arith.constant dense<0.000000e+00> : vector<8x128xf32>
    %68 = tpu.matmul %67, %60, %cst_40 {dimension_numbers = #tpu.dot_dimension_numbers<[1], [0], [0], [1], [0, 0, 1, 1], [], []>} : vector<8x128xf32>, vector<128x128xf32>, vector<8x128xf32> -> vector<8x128xf32>
    %cst_41 = arith.constant 0.0322580636 : f32
    %69 = vector.broadcast %cst_41 : f32 to vector<8x128xf32>
    %70 = arith.mulf %68, %69 : vector<8x128xf32>
    %71 = math.sqrt %70 : vector<8x128xf32>
    %cst_42 = arith.constant 9.99999997E-7 : f32
    %72 = vector.broadcast %cst_42 : f32 to vector<8x128xf32>
    %73 = arith.addf %71, %72 : vector<8x128xf32>
    %74 = tpu.reciprocal %73 : vector<8x128xf32> -> vector<8x128xf32>
    %75 = vector.broadcast %61 : vector<1x128xf32> to vector<8x128xf32>
    %76 = arith.mulf %75, %66 : vector<8x128xf32>
    %77 = arith.mulf %76, %74 : vector<8x128xf32>
    %78 = vector.broadcast %62 : vector<1x128xf32> to vector<8x128xf32>
    %79 = arith.addf %77, %78 : vector<8x128xf32>
    %c432 = arith.constant 432 : index
    %c0_43 = arith.constant 0 : index
    %80 = vector.load %arg1[%c432, %c0_43] : memref<728x128xf32, #tpu.memory_space<vmem>>, vector<128x128xf32>
    %c712 = arith.constant 712 : index
    %c0_44 = arith.constant 0 : index
    %81 = vector.load %arg1[%c712, %c0_44] : memref<728x128xf32, #tpu.memory_space<vmem>>, vector<1x128xf32>
    %cst_45 = arith.constant dense<0.000000e+00> : vector<8x128xf32>
    %82 = tpu.matmul %79, %80, %cst_45 {dimension_numbers = #tpu.dot_dimension_numbers<[1], [0], [0], [1], [0, 0, 1, 1], [], []>} : vector<8x128xf32>, vector<128x128xf32>, vector<8x128xf32> -> vector<8x128xf32>
    %83 = vector.broadcast %81 : vector<1x128xf32> to vector<8x128xf32>
    %84 = arith.addf %82, %83 : vector<8x128xf32>
    %cst_46 = arith.constant 0.000000e+00 : f32
    %85 = vector.broadcast %cst_46 : f32 to vector<8x128xf32>
    %86 = arith.maximumf %84, %85 : vector<8x128xf32>
    %c560 = arith.constant 560 : index
    %c0_47 = arith.constant 0 : index
    %87 = vector.load %arg1[%c560, %c0_47] : memref<728x128xf32, #tpu.memory_space<vmem>>, vector<128x128xf32>
    %c720 = arith.constant 720 : index
    %c0_48 = arith.constant 0 : index
    %88 = vector.load %arg1[%c720, %c0_48] : memref<728x128xf32, #tpu.memory_space<vmem>>, vector<1x128xf32>
    %cst_49 = arith.constant dense<0.000000e+00> : vector<8x128xf32>
    %89 = tpu.matmul %86, %87, %cst_49 {dimension_numbers = #tpu.dot_dimension_numbers<[1], [0], [0], [1], [0, 0, 1, 1], [], []>} : vector<8x128xf32>, vector<128x128xf32>, vector<8x128xf32> -> vector<8x128xf32>
    %90 = vector.broadcast %88 : vector<1x128xf32> to vector<8x128xf32>
    %91 = arith.addf %89, %90 : vector<8x128xf32>
    %92 = arith.addf %59, %91 : vector<8x128xf32>
    %c8 = arith.constant 8 : index
    %c0_50 = arith.constant 0 : index
    %93 = vector.load %arg3[%c8, %c0_50] : memref<16x128xf32, #tpu.memory_space<vmem>>, vector<8x128xf32>
    tpu.vector_store %arg3[%c8, %c0_50], %92 {strides = array<i32>} : memref<16x128xf32, #tpu.memory_space<vmem>>, vector<8x128xf32>,
    return
  }
}

</mosaic_0001>

<llo_original>
// kernel: tpu_custom_call.1
$region0: #{tpu_custom_call.1}
  #allocation0 [shape = 'u32[]', space=smem, size = 0x4, offset = 0x4, fixed_abs, tag = 'smem constant byte address 0x4 - core index']
  #allocation1 [shape = 'u32[144,128]{1,0:T(1,128)}', space=vmem, size = 0x12000, scoped, tag = 'internal scratch']
  %s0 = inlined_call_operand.hbm [shape: f32[8,128], index: 0, kind: input, shape index: {}]
  %s1 = inlined_call_operand.hbm [shape: f32[728,128], index: 1, kind: input, shape index: {}]
  %s2 = inlined_call_operand.hbm [shape: f32[4,8,8], index: 2, kind: input, shape index: {}]
  %s3 = inlined_call_operand.hbm [shape: f32[16,128], index: 3, kind: output, shape index: {}]
  %s4 = sld [smem:[#allocation0]]
  $region34: #{tpu_custom_call.1} parent=0
    _
  %s6 = ssub.s32 1, %s4
  %s7 = scalar_select 0, %s6, %s4
  $region1: #{tpu_custom_call.1} parent=0
    #allocation2 [shape = 'u8[4096]{0}', space=vmem, size = 0x1000, scoped, tag = 'input window, operand 0, single buffered']
    #allocation3 [shape = 's32[1]{0}', space=sflag, size = 0x4, scoped, tag = 'scoped memory for tpu_custom_call.1']
    #allocation4 [shape = 's32[1]{0}', space=sflag, size = 0x4, scoped, tag = 'scoped memory for tpu_custom_call.1']
    #allocation5 [shape = 'u8[372736]{0}', space=vmem, size = 0x5b000, scoped, tag = 'input window, operand 1, single buffered']
    #allocation6 [shape = 's32[1]{0}', space=sflag, size = 0x4, scoped, tag = 'scoped memory for tpu_custom_call.1']
    #allocation7 [shape = 'u8[16384]{0}', space=vmem, size = 0x4000, scoped, tag = 'input window, operand 2, single buffered']
    #allocation8 [shape = 'u8[8192]{0}', space=vmem, size = 0x2000, scoped, tag = 'output window, operand 0, single buffered']
    %8 = vsyncpa [#allocation3], 0
    %9 = vsyncpa [#allocation6], 0
    %10 = vsyncpa [#allocation4], 0
    // Predicated region
    $region2: #{tpu_custom_call.1} parent=1 // pred_check
      _
    $region3: #{tpu_custom_call.1} parent=1 // pred_check_branch
      %12 = sbr.rel (0) target = $region5
    $region4: #{tpu_custom_call.1} parent=1 // pred_region
      %s14 = ssub.s32 128, 128
      %15 = vsyncadd [#allocation3], %s14
      %s17 = sshll.u32 [#allocation2], 4
      %s18 = int_to_ptr.vmem [resolvable:$true] %s17
      %20 = dma.hbm_to_vmem [thread:$0]  %s0, 128, %s18, [#allocation3]
    $region5: #{tpu_custom_call.1} parent=1 // pred_fallthru
      _
    // Predicated region
    $region6: #{tpu_custom_call.1} parent=1 // pred_check
      _
    $region7: #{tpu_custom_call.1} parent=1 // pred_check_branch
      %22 = sbr.rel (0) target = $region9
    $region8: #{tpu_custom_call.1} parent=1 // pred_region
      %s24 = ssub.s32 11648, 11648
      %25 = vsyncadd [#allocation6], %s24
      %s26 = sshll.u32 [#allocation5], 4
      %s27 = int_to_ptr.vmem [resolvable:$true] %s26
      %32 = dma.hbm_to_vmem [thread:$0]  %s1, 11648, %s27, [#allocation6], 128, 128, 8
    $region9: #{tpu_custom_call.1} parent=1 // pred_fallthru
      _
    // Predicated region
    $region10: #{tpu_custom_call.1} parent=1 // pred_check
      _
    $region11: #{tpu_custom_call.1} parent=1 // pred_check_branch
      %34 = sbr.rel (0) target = $region13
    $region12: #{tpu_custom_call.1} parent=1 // pred_region
      %s36 = ssub.s32 512, 512
      %37 = vsyncadd [#allocation6], %s36
      %s38 = sshll.u32 [#allocation7], 4
      %s39 = int_to_ptr.vmem [resolvable:$true] %s38
      %44 = dma.hbm_to_vmem [thread:$0]  %s2, 512, %s39, [#allocation6], 128, 128, 8
    $region13: #{tpu_custom_call.1} parent=1 // pred_fallthru
      _
    // Predicated region
    $region14: #{tpu_custom_call.1} parent=1 // pred_check
      _
    $region15: #{tpu_custom_call.1} parent=1 // pred_check_branch
      %46 = sbr.rel (0) target = $region17
    $region16: #{tpu_custom_call.1} parent=1 // pred_region
      %47 = dma.done [#allocation3], 128
    $region17: #{tpu_custom_call.1} parent=1 // pred_fallthru
      _
    // Predicated region
    $region18: #{tpu_custom_call.1} parent=1 // pred_check
      _
    $region19: #{tpu_custom_call.1} parent=1 // pred_check_branch
      %49 = sbr.rel (0) target = $region21
    $region20: #{tpu_custom_call.1} parent=1 // pred_region
      %50 = dma.done [#allocation6], 11648
    $region21: #{tpu_custom_call.1} parent=1 // pred_fallthru
      _
    // Predicated region
    $region22: #{tpu_custom_call.1} parent=1 // pred_check
      _
    $region23: #{tpu_custom_call.1} parent=1 // pred_check_branch
      %52 = sbr.rel (0) target = $region25
    $region24: #{tpu_custom_call.1} parent=1 // pred_region
      %53 = dma.done [#allocation6], 512
    $region25: #{tpu_custom_call.1} parent=1 // pred_fallthru
      _
    %v54 = vld [vmem:[#allocation5 + $0x80] sm:$0x1]
    %v55 = vld [vmem:[#allocation2] sm:$0xff]
    %v56 = vld [vmem:[#allocation7] sm:$0xff]
    %s57 = scalar_lea.vmem [#allocation7], 8
    %v58 = vld [vmem:[%s57] sm:$0xff]
    %v59 = vld [vmem:[#allocation5 + $0x188] sm:$0xff]
    %vm60 = vcmask 64512
    %v62 = vsel %vm60, %v56, 0
    %64 = vmatprep.subr.mxu0 0.0
    %65 = vmatpush1.msra.mxu0 %v55
    %66 = vmatprep.subr.mxu0 0.0
    %67 = vmatpush1.msra.mxu0 0.0
    %68 = vmatprep.subr.mxu0 0.0
    %69 = vmatpush1.msra.mxu0 0.0
    %70 = vmatprep.subr.mxu0 0.0
    %71 = vmatpush1.msra.mxu0 0.0
    %72 = vmatprep.subr.mxu0 0.0
    %73 = vmatpush1.msra.mxu0 0.0
    %74 = vmatprep.subr.mxu0 0.0
    %75 = vmatpush1.msra.mxu0 0.0
    %76 = vmatprep.subr.mxu0 0.0
    %77 = vmatpush1.msra.mxu0 0.0
    %78 = vmatprep.subr.mxu0 0.0
    %79 = vmatpush1.msra.mxu0 0.0
    %80 = vmatprep.subr.mxu0 0.0
    %81 = vmatpush1.msra.mxu0 0.0
    %82 = vmatprep.subr.mxu0 0.0
    %83 = vmatpush1.msra.mxu0 0.0
    %84 = vmatprep.subr.mxu0 0.0
    %85 = vmatpush1.msra.mxu0 0.0
    %86 = vmatprep.subr.mxu0 0.0
    %87 = vmatpush1.msra.mxu0 0.0
    %88 = vmatprep.subr.mxu0 0.0
    %89 = vmatpush1.msra.mxu0 0.0
    %90 = vmatprep.subr.mxu0 0.0
    %91 = vmatpush1.msra.mxu0 0.0
    %92 = vmatprep.subr.mxu0 0.0
    %93 = vmatpush1.msra.mxu0 0.0
    %94 = vmatprep.subr.mxu0 0.0
    %95 = vmatpush1.msra.mxu0 0.0
    %96 = vmatprep.subr.mxu0 0.0
    %97 = vmatpush1.msra.mxu0 0.0
    %98 = vmatprep.subr.mxu0 0.0
    %99 = vmatpush1.msra.mxu0 0.0
    %100 = vmatprep.subr.mxu0 0.0
    %101 = vmatpush1.msra.mxu0 0.0
    %102 = vmatprep.subr.mxu0 0.0
    %103 = vmatpush1.msra.mxu0 0.0
    %104 = vmatprep.subr.mxu0 0.0
    %105 = vmatpush1.msra.mxu0 0.0
    %106 = vmatprep.subr.mxu0 0.0
    %107 = vmatpush1.msra.mxu0 0.0
    %108 = vmatprep.subr.mxu0 0.0
    %109 = vmatpush1.msra.mxu0 0.0
    %110 = vmatprep.subr.mxu0 0.0
    %111 = vmatpush1.msra.mxu0 0.0
    %112 = vmatprep.subr.mxu0 0.0
    %113 = vmatpush1.msra.mxu0 0.0
    %114 = vmatprep.subr.mxu0 0.0
    %115 = vmatpush1.msra.mxu0 0.0
    %116 = vmatprep.subr.mxu0 0.0
    %117 = vmatpush1.msra.mxu0 0.0
    %118 = vmatprep.subr.mxu0 0.0
    %119 = vmatpush1.msra.mxu0 0.0
    %120 = vmatprep.subr.mxu0 0.0
    %121 = vmatpush1.msra.mxu0 0.0
    %122 = vmatprep.subr.mxu0 0.0
    %123 = vmatpush1.msra.mxu0 0.0
    %124 = vmatprep.subr.mxu0 0.0
    %125 = vmatpush1.msra.mxu0 0.0
    %126 = vmatprep.subr.mxu0 0.0
    %127 = vmatpush1.msra.mxu0 0.0
    %128 = vmatprep.mubr.f32.mxu0 0.0
    %129 = vmatmul.mubr.f32.gmra.mrb[0].mxu0 %v62
    %v130 = vpop.f32.mrb[0].mxu0
    %v131 = vadd.f32 0.0, %v130
    %v132 = vpop.f32.mrb[0].mxu0
    %133 = vdwg.mxu0
    %v135 = vsel %vm60, %v58, 0
    %137 = vmatprep.subr.mxu0 0.0
    %138 = vmatpush1.msra.mxu0 %v55
    %139 = vmatprep.subr.mxu0 0.0
    %140 = vmatpush1.msra.mxu0 0.0
    %141 = vmatprep.subr.mxu0 0.0
    %142 = vmatpush1.msra.mxu0 0.0
    %143 = vmatprep.subr.mxu0 0.0
    %144 = vmatpush1.msra.mxu0 0.0
    %145 = vmatprep.subr.mxu0 0.0
    %146 = vmatpush1.msra.mxu0 0.0
    %147 = vmatprep.subr.mxu0 0.0
    %148 = vmatpush1.msra.mxu0 0.0
    %149 = vmatprep.subr.mxu0 0.0
    %150 = vmatpush1.msra.mxu0 0.0
    %151 = vmatprep.subr.mxu0 0.0
    %152 = vmatpush1.msra.mxu0 0.0
    %153 = vmatprep.subr.mxu0 0.0
    %154 = vmatpush1.msra.mxu0 0.0
    %155 = vmatprep.subr.mxu0 0.0
    %156 = vmatpush1.msra.mxu0 0.0
    %157 = vmatprep.subr.mxu0 0.0
    %158 = vmatpush1.msra.mxu0 0.0
    %159 = vmatprep.subr.mxu0 0.0
    %160 = vmatpush1.msra.mxu0 0.0
    %161 = vmatprep.subr.mxu0 0.0
    %162 = vmatpush1.msra.mxu0 0.0
    %163 = vmatprep.subr.mxu0 0.0
    %164 = vmatpush1.msra.mxu0 0.0
    %165 = vmatprep.subr.mxu0 0.0
    %166 = vmatpush1.msra.mxu0 0.0
    %167 = vmatprep.subr.mxu0 0.0
    %168 = vmatpush1.msra.mxu0 0.0
    %169 = vmatprep.subr.mxu0 0.0
    %170 = vmatpush1.msra.mxu0 0.0
    %171 = vmatprep.subr.mxu0 0.0
    %172 = vmatpush1.msra.mxu0 0.0
    %173 = vmatprep.subr.mxu0 0.0
    %174 = vmatpush1.msra.mxu0 0.0
    %175 = vmatprep.subr.mxu0 0.0
    %176 = vmatpush1.msra.mxu0 0.0
    %177 = vmatprep.subr.mxu0 0.0
    %178 = vmatpush1.msra.mxu0 0.0
    %179 = vmatprep.subr.mxu0 0.0
    %180 = vmatpush1.msra.mxu0 0.0
    %181 = vmatprep.subr.mxu0 0.0
    %182 = vmatpush1.msra.mxu0 0.0
    %183 = vmatprep.subr.mxu0 0.0
    %184 = vmatpush1.msra.mxu0 0.0
    %185 = vmatprep.subr.mxu0 0.0
    %186 = vmatpush1.msra.mxu0 0.0
    %187 = vmatprep.subr.mxu0 0.0
    %188 = vmatpush1.msra.mxu0 0.0
    %189 = vmatprep.subr.mxu0 0.0
    %190 = vmatpush1.msra.mxu0 0.0
    %191 = vmatprep.subr.mxu0 0.0
    %192 = vmatpush1.msra.mxu0 0.0
    %193 = vmatprep.subr.mxu0 0.0
    %194 = vmatpush1.msra.mxu0 0.0
    %195 = vmatprep.subr.mxu0 0.0
    %196 = vmatpush1.msra.mxu0 0.0
    %197 = vmatprep.subr.mxu0 0.0
    %198 = vmatpush1.msra.mxu0 0.0
    %199 = vmatprep.subr.mxu0 0.0
    %200 = vmatpush1.msra.mxu0 0.0
    %201 = vmatprep.mubr.f32.mxu0 0.0
    %202 = vmatmul.mubr.f32.gmra.mrb[0].mxu0 %v135
    %v203 = vpop.f32.mrb[0].mxu0
    %v204 = vadd.f32 0.0, %v203
    %v205 = vpop.f32.mrb[0].mxu0
    %206 = vdwg.mxu0
    %v207 = vsub.f32 %v131, %v204
    %v208 = vlaneseq
    %v209 = vshrl.u32 %v208, 7
    %v210 = vsub.s32 0, %v209
    %v211 = vrot.slane %v54, %v210
    %v212 = vmul.f32 %v211, %v207
    %v213 = vadd.f32 %v204, %v212
    %v214 = vadd.f32 %v213, %v59
    %v215 = vld [vmem:[#allocation5] sm:$0xff]
    %v216 = vld [vmem:[#allocation5 + $0x8] sm:$0xff]
    %v217 = vld [vmem:[#allocation5 + $0x10] sm:$0xff]
    %v218 = vld [vmem:[#allocation5 + $0x18] sm:$0xff]
    %v219 = vld [vmem:[#allocation5 + $0x20] sm:$0xff]
    %v220 = vld [vmem:[#allocation5 + $0x28] sm:$0xff]
    %v221 = vld [vmem:[#allocation5 + $0x30] sm:$0xff]
    %v222 = vld [vmem:[#allocation5 + $0x38] sm:$0xff]
    %v223 = vld [vmem:[#allocation5 + $0x40] sm:$0xff]
    %v224 = vld [vmem:[#allocation5 + $0x48] sm:$0xff]
    %v225 = vld [vmem:[#allocation5 + $0x50] sm:$0xff]
    %v226 = vld [vmem:[#allocation5 + $0x58] sm:$0xff]
    %v227 = vld [vmem:[#allocation5 + $0x60] sm:$0xff]
    %v228 = vld [vmem:[#allocation5 + $0x68] sm:$0xff]
    %v229 = vld [vmem:[#allocation5 + $0x70] sm:$0xff]
    %v230 = vld [vmem:[#allocation5 + $0x78] sm:$0xff]
    %v231 = vld [vmem:[#allocation5 + $0x190] sm:$0x1]
    %v232 = vld [vmem:[#allocation5 + $0x198] sm:$0x1]
    %233 = vmatprep.subr.mxu0 0.0
    %234 = vmatpush1.msra.mxu0 %v215
    %235 = vmatprep.subr.mxu0 0.0
    %236 = vmatpush1.msra.mxu0 %v216
    %237 = vmatprep.subr.mxu0 0.0
    %238 = vmatpush1.msra.mxu0 %v217
    %239 = vmatprep.subr.mxu0 0.0
    %240 = vmatpush1.msra.mxu0 %v218
    %241 = vmatprep.subr.mxu0 0.0
    %242 = vmatpush1.msra.mxu0 %v219
    %243 = vmatprep.subr.mxu0 0.0
    %244 = vmatpush1.msra.mxu0 %v220
    %245 = vmatprep.subr.mxu0 0.0
    %246 = vmatpush1.msra.mxu0 %v221
    %247 = vmatprep.subr.mxu0 0.0
    %248 = vmatpush1.msra.mxu0 %v222
    %249 = vmatprep.subr.mxu0 0.0
    %250 = vmatpush1.msra.mxu0 %v223
    %251 = vmatprep.subr.mxu0 0.0
    %252 = vmatpush1.msra.mxu0 %v224
    %253 = vmatprep.subr.mxu0 0.0
    %254 = vmatpush1.msra.mxu0 %v225
    %255 = vmatprep.subr.mxu0 0.0
    %256 = vmatpush1.msra.mxu0 %v226
    %257 = vmatprep.subr.mxu0 0.0
    %258 = vmatpush1.msra.mxu0 %v227
    %259 = vmatprep.subr.mxu0 0.0
    %260 = vmatpush1.msra.mxu0 %v228
    %261 = vmatprep.subr.mxu0 0.0
    %262 = vmatpush1.msra.mxu0 %v229
    %263 = vmatprep.subr.mxu0 0.0
    %264 = vmatpush1.msra.mxu0 %v230
    %265 = vmatprep.subr.mxu0 0.0
    %266 = vmatpush1.msra.mxu0 0.0
    %267 = vmatprep.subr.mxu0 0.0
    %268 = vmatpush1.msra.mxu0 0.0
    %269 = vmatprep.subr.mxu0 0.0
    %270 = vmatpush1.msra.mxu0 0.0
    %271 = vmatprep.subr.mxu0 0.0
    %272 = vmatpush1.msra.mxu0 0.0
    %273 = vmatprep.subr.mxu0 0.0
    %274 = vmatpush1.msra.mxu0 0.0
    %275 = vmatprep.subr.mxu0 0.0
    %276 = vmatpush1.msra.mxu0 0.0
    %277 = vmatprep.subr.mxu0 0.0
    %278 = vmatpush1.msra.mxu0 0.0
    %279 = vmatprep.subr.mxu0 0.0
    %280 = vmatpush1.msra.mxu0 0.0
    %281 = vmatprep.subr.mxu0 0.0
    %282 = vmatpush1.msra.mxu0 0.0
    %283 = vmatprep.subr.mxu0 0.0
    %284 = vmatpush1.msra.mxu0 0.0
    %285 = vmatprep.subr.mxu0 0.0
    %286 = vmatpush1.msra.mxu0 0.0
    %287 = vmatprep.subr.mxu0 0.0
    %288 = vmatpush1.msra.mxu0 0.0
    %289 = vmatprep.subr.mxu0 0.0
    %290 = vmatpush1.msra.mxu0 0.0
    %291 = vmatprep.subr.mxu0 0.0
    %292 = vmatpush1.msra.mxu0 0.0
    %293 = vmatprep.subr.mxu0 0.0
    %294 = vmatpush1.msra.mxu0 0.0
    %295 = vmatprep.subr.mxu0 0.0
    %296 = vmatpush1.msra.mxu0 0.0
    %297 = vmatprep.mubr.f32.mxu0 0.0
    %298 = vmatmul.mubr.f32.gmra.mrb[0].mxu0 %v214
    %v299 = vpop.f32.mrb[0].mxu0
    %v300 = vadd.f32 0.0, %v299
    %v301 = vpop.f32.mrb[0].mxu0
    %302 = vdwg.mxu0
    %v303 = vmul.f32 %v300, 0.03125
    %v304 = vsub.f32 %v214, %v303
    %v305 = vmul.f32 %v304, %v304
    %306 = vmatprep.subr.mxu0 0.0
    %307 = vmatpush1.msra.mxu0 %v215
    %308 = vmatprep.subr.mxu0 0.0
    %309 = vmatpush1.msra.mxu0 %v216
    %310 = vmatprep.subr.mxu0 0.0
    %311 = vmatpush1.msra.mxu0 %v217
    %312 = vmatprep.subr.mxu0 0.0
    %313 = vmatpush1.msra.mxu0 %v218
    %314 = vmatprep.subr.mxu0 0.0
    %315 = vmatpush1.msra.mxu0 %v219
    %316 = vmatprep.subr.mxu0 0.0
    %317 = vmatpush1.msra.mxu0 %v220
    %318 = vmatprep.subr.mxu0 0.0
    %319 = vmatpush1.msra.mxu0 %v221
    %320 = vmatprep.subr.mxu0 0.0
    %321 = vmatpush1.msra.mxu0 %v222
    %322 = vmatprep.subr.mxu0 0.0
    %323 = vmatpush1.msra.mxu0 %v223
    %324 = vmatprep.subr.mxu0 0.0
    %325 = vmatpush1.msra.mxu0 %v224
    %326 = vmatprep.subr.mxu0 0.0
    %327 = vmatpush1.msra.mxu0 %v225
    %328 = vmatprep.subr.mxu0 0.0
    %329 = vmatpush1.msra.mxu0 %v226
    %330 = vmatprep.subr.mxu0 0.0
    %331 = vmatpush1.msra.mxu0 %v227
    %332 = vmatprep.subr.mxu0 0.0
    %333 = vmatpush1.msra.mxu0 %v228
    %334 = vmatprep.subr.mxu0 0.0
    %335 = vmatpush1.msra.mxu0 %v229
    %336 = vmatprep.subr.mxu0 0.0
    %337 = vmatpush1.msra.mxu0 %v230
    %338 = vmatprep.subr.mxu0 0.0
    %339 = vmatpush1.msra.mxu0 0.0
    %340 = vmatprep.subr.mxu0 0.0
    %341 = vmatpush1.msra.mxu0 0.0
    %342 = vmatprep.subr.mxu0 0.0
    %343 = vmatpush1.msra.mxu0 0.0
    %344 = vmatprep.subr.mxu0 0.0
    %345 = vmatpush1.msra.mxu0 0.0
    %346 = vmatprep.subr.mxu0 0.0
    %347 = vmatpush1.msra.mxu0 0.0
    %348 = vmatprep.subr.mxu0 0.0
    %349 = vmatpush1.msra.mxu0 0.0
    %350 = vmatprep.subr.mxu0 0.0
    %351 = vmatpush1.msra.mxu0 0.0
    %352 = vmatprep.subr.mxu0 0.0
    %353 = vmatpush1.msra.mxu0 0.0
    %354 = vmatprep.subr.mxu0 0.0
    %355 = vmatpush1.msra.mxu0 0.0
    %356 = vmatprep.subr.mxu0 0.0
    %357 = vmatpush1.msra.mxu0 0.0
    %358 = vmatprep.subr.mxu0 0.0
    %359 = vmatpush1.msra.mxu0 0.0
    %360 = vmatprep.subr.mxu0 0.0
    %361 = vmatpush1.msra.mxu0 0.0
    %362 = vmatprep.subr.mxu0 0.0
    %363 = vmatpush1.msra.mxu0 0.0
    %364 = vmatprep.subr.mxu0 0.0
    %365 = vmatpush1.msra.mxu0 0.0
    %366 = vmatprep.subr.mxu0 0.0
    %367 = vmatpush1.msra.mxu0 0.0
    %368 = vmatprep.subr.mxu0 0.0
    %369 = vmatpush1.msra.mxu0 0.0
    %370 = vmatprep.mubr.f32.mxu0 0.0
    %371 = vmatmul.mubr.f32.gmra.mrb[0].mxu0 %v305
    %v372 = vpop.f32.mrb[0].mxu0
    %v373 = vadd.f32 0.0, %v372
    %v374 = vpop.f32.mrb[0].mxu0
    %375 = vdwg.mxu0
    %v376 = vmul.f32 %v373, 0.032258064
    %v377 = vrsqrt.pop %v376
    %v378 = vmul.f32 %v376, %v377
    %vm379 = vcmp.eq.f32.partialorder %v376, inf
    %v380 = vsel %vm379, %v376, %v378
    %vm381 = vcmp.eq.f32.partialorder %v376, 0.0
    %v382 = vand.u32 %v376, 2147483648
    %v383 = vsel %vm381, %v382, %v380
    %v384 = vadd.f32 %v383, 1e-06
    %v385 = vrcp.pop %v384
    %v386 = vlaneseq
    %v387 = vshrl.u32 %v386, 7
    %v388 = vsub.s32 0, %v387
    %v389 = vrot.slane %v231, %v388
    %v390 = vmul.f32 %v389, %v304
    %v391 = vmul.f32 %v390, %v385
    %v392 = vlaneseq
    %v393 = vshrl.u32 %v392, 7
    %v394 = vsub.s32 0, %v393
    %v395 = vrot.slane %v232, %v394
    %v396 = vadd.f32 %v391, %v395
    %v397 = vld [vmem:[#allocation5 + $0x88] sm:$0xff]
    %v398 = vld [vmem:[#allocation5 + $0x90] sm:$0xff]
    %v399 = vld [vmem:[#allocation5 + $0x98] sm:$0xff]
    %v400 = vld [vmem:[#allocation5 + $0xa0] sm:$0xff]
    %v401 = vld [vmem:[#allocation5 + $0xa8] sm:$0xff]
    %v402 = vld [vmem:[#allocation5 + $0xb0] sm:$0xff]
    %v403 = vld [vmem:[#allocation5 + $0xb8] sm:$0xff]
    %v404 = vld [vmem:[#allocation5 + $0xc0] sm:$0xff]
    %v405 = vld [vmem:[#allocation5 + $0xc8] sm:$0xff]
    %v406 = vld [vmem:[#allocation5 + $0xd0] sm:$0xff]
    %v407 = vld [vmem:[#allocation5 + $0xd8] sm:$0xff]
    %v408 = vld [vmem:[#allocation5 + $0xe0] sm:$0xff]
    %v409 = vld [vmem:[#allocation5 + $0xe8] sm:$0xff]
    %v410 = vld [vmem:[#allocation5 + $0xf0] sm:$0xff]
    %v411 = vld [vmem:[#allocation5 + $0xf8] sm:$0xff]
    %v412 = vld [vmem:[#allocation5 + $0x100] sm:$0xff]
    %v413 = vld [vmem:[#allocation5 + $0x1a0] sm:$0x1]
    %v414 = vlaneseq
    %v415 = vshrl.u32 %v414, 7
    %v416 = vsub.s32 0, %v415
    %v417 = vrot.slane %v413, %v416
    %418 = vmatprep.subr.mxu0 0.0
    %419 = vmatpush1.msra.mxu0 %v397
    %420 = vmatprep.subr.mxu0 0.0
    %421 = vmatpush1.msra.mxu0 %v398
    %422 = vmatprep.subr.mxu0 0.0
    %423 = vmatpush1.msra.mxu0 %v399
    %424 = vmatprep.subr.mxu0 0.0
    %425 = vmatpush1.msra.mxu0 %v400
    %426 = vmatprep.subr.mxu0 0.0
    %427 = vmatpush1.msra.mxu0 %v401
    %428 = vmatprep.subr.mxu0 0.0
    %429 = vmatpush1.msra.mxu0 %v402
    %430 = vmatprep.subr.mxu0 0.0
    %431 = vmatpush1.msra.mxu0 %v403
    %432 = vmatprep.subr.mxu0 0.0
    %433 = vmatpush1.msra.mxu0 %v404
    %434 = vmatprep.subr.mxu0 0.0
    %435 = vmatpush1.msra.mxu0 %v405
    %436 = vmatprep.subr.mxu0 0.0
    %437 = vmatpush1.msra.mxu0 %v406
    %438 = vmatprep.subr.mxu0 0.0
    %439 = vmatpush1.msra.mxu0 %v407
    %440 = vmatprep.subr.mxu0 0.0
    %441 = vmatpush1.msra.mxu0 %v408
    %442 = vmatprep.subr.mxu0 0.0
    %443 = vmatpush1.msra.mxu0 %v409
    %444 = vmatprep.subr.mxu0 0.0
    %445 = vmatpush1.msra.mxu0 %v410
    %446 = vmatprep.subr.mxu0 0.0
    %447 = vmatpush1.msra.mxu0 %v411
    %448 = vmatprep.subr.mxu0 0.0
    %449 = vmatpush1.msra.mxu0 %v412
    %450 = vmatprep.subr.mxu0 0.0
    %451 = vmatpush1.msra.mxu0 0.0
    %452 = vmatprep.subr.mxu0 0.0
    %453 = vmatpush1.msra.mxu0 0.0
    %454 = vmatprep.subr.mxu0 0.0
    %455 = vmatpush1.msra.mxu0 0.0
    %456 = vmatprep.subr.mxu0 0.0
    %457 = vmatpush1.msra.mxu0 0.0
    %458 = vmatprep.subr.mxu0 0.0
    %459 = vmatpush1.msra.mxu0 0.0
    %460 = vmatprep.subr.mxu0 0.0
    %461 = vmatpush1.msra.mxu0 0.0
    %462 = vmatprep.subr.mxu0 0.0
    %463 = vmatpush1.msra.mxu0 0.0
    %464 = vmatprep.subr.mxu0 0.0
    %465 = vmatpush1.msra.mxu0 0.0
    %466 = vmatprep.subr.mxu0 0.0
    %467 = vmatpush1.msra.mxu0 0.0
    %468 = vmatprep.subr.mxu0 0.0
    %469 = vmatpush1.msra.mxu0 0.0
    %470 = vmatprep.subr.mxu0 0.0
    %471 = vmatpush1.msra.mxu0 0.0
    %472 = vmatprep.subr.mxu0 0.0
    %473 = vmatpush1.msra.mxu0 0.0
    %474 = vmatprep.subr.mxu0 0.0
    %475 = vmatpush1.msra.mxu0 0.0
    %476 = vmatprep.subr.mxu0 0.0
    %477 = vmatpush1.msra.mxu0 0.0
    %478 = vmatprep.subr.mxu0 0.0
    %479 = vmatpush1.msra.mxu0 0.0
    %480 = vmatprep.subr.mxu0 0.0
    %481 = vmatpush1.msra.mxu0 0.0
    %482 = vmatprep.mubr.f32.mxu0 0.0
    %483 = vmatmul.mubr.f32.gmra.mrb[0].mxu0 %v396
    %v484 = vpop.f32.mrb[0].mxu0
    %v485 = vadd.f32 %v417, %v484
    %v486 = vpop.f32.mrb[0].mxu0
    %487 = vdwg.mxu0
    %v488 = vmax.f32 %v485, 0.0
    %v489 = vld [vmem:[#allocation5 + $0x108] sm:$0xff]
    %v490 = vld [vmem:[#allocation5 + $0x110] sm:$0xff]
    %v491 = vld [vmem:[#allocation5 + $0x118] sm:$0xff]
    %v492 = vld [vmem:[#allocation5 + $0x120] sm:$0xff]
    %v493 = vld [vmem:[#allocation5 + $0x128] sm:$0xff]
    %v494 = vld [vmem:[#allocation5 + $0x130] sm:$0xff]
    %v495 = vld [vmem:[#allocation5 + $0x138] sm:$0xff]
    %v496 = vld [vmem:[#allocation5 + $0x140] sm:$0xff]
    %v497 = vld [vmem:[#allocation5 + $0x148] sm:$0xff]
    %v498 = vld [vmem:[#allocation5 + $0x150] sm:$0xff]
    %v499 = vld [vmem:[#allocation5 + $0x158] sm:$0xff]
    %v500 = vld [vmem:[#allocation5 + $0x160] sm:$0xff]
    %v501 = vld [vmem:[#allocation5 + $0x168] sm:$0xff]
    %v502 = vld [vmem:[#allocation5 + $0x170] sm:$0xff]
    %v503 = vld [vmem:[#allocation5 + $0x178] sm:$0xff]
    %v504 = vld [vmem:[#allocation5 + $0x180] sm:$0xff]
    %v505 = vld [vmem:[#allocation5 + $0x1a8] sm:$0x1]
    %v506 = vlaneseq
    %v507 = vshrl.u32 %v506, 7
    %v508 = vsub.s32 0, %v507
    %v509 = vrot.slane %v505, %v508
    %510 = vmatprep.subr.mxu0 0.0
    %511 = vmatpush1.msra.mxu0 %v489
    %512 = vmatprep.subr.mxu0 0.0
    %513 = vmatpush1.msra.mxu0 %v490
    %514 = vmatprep.subr.mxu0 0.0
    %515 = vmatpush1.msra.mxu0 %v491
    %516 = vmatprep.subr.mxu0 0.0
    %517 = vmatpush1.msra.mxu0 %v492
    %518 = vmatprep.subr.mxu0 0.0
    %519 = vmatpush1.msra.mxu0 %v493
    %520 = vmatprep.subr.mxu0 0.0
    %521 = vmatpush1.msra.mxu0 %v494
    %522 = vmatprep.subr.mxu0 0.0
    %523 = vmatpush1.msra.mxu0 %v495
    %524 = vmatprep.subr.mxu0 0.0
    %525 = vmatpush1.msra.mxu0 %v496
    %526 = vmatprep.subr.mxu0 0.0
    %527 = vmatpush1.msra.mxu0 %v497
    %528 = vmatprep.subr.mxu0 0.0
    %529 = vmatpush1.msra.mxu0 %v498
    %530 = vmatprep.subr.mxu0 0.0
    %531 = vmatpush1.msra.mxu0 %v499
    %532 = vmatprep.subr.mxu0 0.0
    %533 = vmatpush1.msra.mxu0 %v500
    %534 = vmatprep.subr.mxu0 0.0
    %535 = vmatpush1.msra.mxu0 %v501
    %536 = vmatprep.subr.mxu0 0.0
    %537 = vmatpush1.msra.mxu0 %v502
    %538 = vmatprep.subr.mxu0 0.0
    %539 = vmatpush1.msra.mxu0 %v503
    %540 = vmatprep.subr.mxu0 0.0
    %541 = vmatpush1.msra.mxu0 %v504
    %542 = vmatprep.subr.mxu0 0.0
    %543 = vmatpush1.msra.mxu0 0.0
    %544 = vmatprep.subr.mxu0 0.0
    %545 = vmatpush1.msra.mxu0 0.0
    %546 = vmatprep.subr.mxu0 0.0
    %547 = vmatpush1.msra.mxu0 0.0
    %548 = vmatprep.subr.mxu0 0.0
    %549 = vmatpush1.msra.mxu0 0.0
    %550 = vmatprep.subr.mxu0 0.0
    %551 = vmatpush1.msra.mxu0 0.0
    %552 = vmatprep.subr.mxu0 0.0
    %553 = vmatpush1.msra.mxu0 0.0
    %554 = vmatprep.subr.mxu0 0.0
    %555 = vmatpush1.msra.mxu0 0.0
    %556 = vmatprep.subr.mxu0 0.0
    %557 = vmatpush1.msra.mxu0 0.0
    %558 = vmatprep.subr.mxu0 0.0
    %559 = vmatpush1.msra.mxu0 0.0
    %560 = vmatprep.subr.mxu0 0.0
    %561 = vmatpush1.msra.mxu0 0.0
    %562 = vmatprep.subr.mxu0 0.0
    %563 = vmatpush1.msra.mxu0 0.0
    %564 = vmatprep.subr.mxu0 0.0
    %565 = vmatpush1.msra.mxu0 0.0
    %566 = vmatprep.subr.mxu0 0.0
    %567 = vmatpush1.msra.mxu0 0.0
    %568 = vmatprep.subr.mxu0 0.0
    %569 = vmatpush1.msra.mxu0 0.0
    %570 = vmatprep.subr.mxu0 0.0
    %571 = vmatpush1.msra.mxu0 0.0
    %572 = vmatprep.subr.mxu0 0.0
    %573 = vmatpush1.msra.mxu0 0.0
    %574 = vmatprep.mubr.f32.mxu0 0.0
    %575 = vmatmul.mubr.f32.gmra.mrb[0].mxu0 %v488
    %v576 = vpop.f32.mrb[0].mxu0
    %v577 = vadd.f32 %v509, %v576
    %v578 = vpop.f32.mrb[0].mxu0
    %579 = vdwg.mxu0
    %v580 = vadd.f32 %v214, %v577
    %581 = vst [vmem:[#allocation8] sm:$0xff] %v580
    %s582 = scalar_lea.vmem [#allocation7], 16
    %v583 = vld [vmem:[%s582] sm:$0xff]
    %s584 = scalar_lea.vmem [#allocation7], 24
    %v585 = vld [vmem:[%s584] sm:$0xff]
    %v586 = vld [vmem:[#allocation5 + $0x2b0] sm:$0xff]
    %v588 = vsel %vm60, %v583, 0
    %590 = vmatprep.subr.mxu0 0.0
    %591 = vmatpush1.msra.mxu0 %v580
    %592 = vmatprep.subr.mxu0 0.0
    %593 = vmatpush1.msra.mxu0 0.0
    %594 = vmatprep.subr.mxu0 0.0
    %595 = vmatpush1.msra.mxu0 0.0
    %596 = vmatprep.subr.mxu0 0.0
    %597 = vmatpush1.msra.mxu0 0.0
    %598 = vmatprep.subr.mxu0 0.0
    %599 = vmatpush1.msra.mxu0 0.0
    %600 = vmatprep.subr.mxu0 0.0
    %601 = vmatpush1.msra.mxu0 0.0
    %602 = vmatprep.subr.mxu0 0.0
    %603 = vmatpush1.msra.mxu0 0.0
    %604 = vmatprep.subr.mxu0 0.0
    %605 = vmatpush1.msra.mxu0 0.0
    %606 = vmatprep.subr.mxu0 0.0
    %607 = vmatpush1.msra.mxu0 0.0
    %608 = vmatprep.subr.mxu0 0.0
    %609 = vmatpush1.msra.mxu0 0.0
    %610 = vmatprep.subr.mxu0 0.0
    %611 = vmatpush1.msra.mxu0 0.0
    %612 = vmatprep.subr.mxu0 0.0
    %613 = vmatpush1.msra.mxu0 0.0
    %614 = vmatprep.subr.mxu0 0.0
    %615 = vmatpush1.msra.mxu0 0.0
    %616 = vmatprep.subr.mxu0 0.0
    %617 = vmatpush1.msra.mxu0 0.0
    %618 = vmatprep.subr.mxu0 0.0
    %619 = vmatpush1.msra.mxu0 0.0
    %620 = vmatprep.subr.mxu0 0.0
    %621 = vmatpush1.msra.mxu0 0.0
    %622 = vmatprep.subr.mxu0 0.0
    %623 = vmatpush1.msra.mxu0 0.0
    %624 = vmatprep.subr.mxu0 0.0
    %625 = vmatpush1.msra.mxu0 0.0
    %626 = vmatprep.subr.mxu0 0.0
    %627 = vmatpush1.msra.mxu0 0.0
    %628 = vmatprep.subr.mxu0 0.0
    %629 = vmatpush1.msra.mxu0 0.0
    %630 = vmatprep.subr.mxu0 0.0
    %631 = vmatpush1.msra.mxu0 0.0
    %632 = vmatprep.subr.mxu0 0.0
    %633 = vmatpush1.msra.mxu0 0.0
    %634 = vmatprep.subr.mxu0 0.0
    %635 = vmatpush1.msra.mxu0 0.0
    %636 = vmatprep.subr.mxu0 0.0
    %637 = vmatpush1.msra.mxu0 0.0
    %638 = vmatprep.subr.mxu0 0.0
    %639 = vmatpush1.msra.mxu0 0.0
    %640 = vmatprep.subr.mxu0 0.0
    %641 = vmatpush1.msra.mxu0 0.0
    %642 = vmatprep.subr.mxu0 0.0
    %643 = vmatpush1.msra.mxu0 0.0
    %644 = vmatprep.subr.mxu0 0.0
    %645 = vmatpush1.msra.mxu0 0.0
    %646 = vmatprep.subr.mxu0 0.0
    %647 = vmatpush1.msra.mxu0 0.0
    %648 = vmatprep.subr.mxu0 0.0
    %649 = vmatpush1.msra.mxu0 0.0
    %650 = vmatprep.subr.mxu0 0.0
    %651 = vmatpush1.msra.mxu0 0.0
    %652 = vmatprep.subr.mxu0 0.0
    %653 = vmatpush1.msra.mxu0 0.0
    %654 = vmatprep.mubr.f32.mxu0 0.0
    %655 = vmatmul.mubr.f32.gmra.mrb[0].mxu0 %v588
    %v656 = vpop.f32.mrb[0].mxu0
    %v657 = vadd.f32 0.0, %v656
    %v658 = vpop.f32.mrb[0].mxu0
    %659 = vdwg.mxu0
    %v661 = vsel %vm60, %v585, 0
    %663 = vmatprep.subr.mxu0 0.0
    %664 = vmatpush1.msra.mxu0 %v580
    %665 = vmatprep.subr.mxu0 0.0
    %666 = vmatpush1.msra.mxu0 0.0
    %667 = vmatprep.subr.mxu0 0.0
    %668 = vmatpush1.msra.mxu0 0.0
    %669 = vmatprep.subr.mxu0 0.0
    %670 = vmatpush1.msra.mxu0 0.0
    %671 = vmatprep.subr.mxu0 0.0
    %672 = vmatpush1.msra.mxu0 0.0
    %673 = vmatprep.subr.mxu0 0.0
    %674 = vmatpush1.msra.mxu0 0.0
    %675 = vmatprep.subr.mxu0 0.0
    %676 = vmatpush1.msra.mxu0 0.0
    %677 = vmatprep.subr.mxu0 0.0
    %678 = vmatpush1.msra.mxu0 0.0
    %679 = vmatprep.subr.mxu0 0.0
    %680 = vmatpush1.msra.mxu0 0.0
    %681 = vmatprep.subr.mxu0 0.0
    %682 = vmatpush1.msra.mxu0 0.0
    %683 = vmatprep.subr.mxu0 0.0
    %684 = vmatpush1.msra.mxu0 0.0
    %685 = vmatprep.subr.mxu0 0.0
    %686 = vmatpush1.msra.mxu0 0.0
    %687 = vmatprep.subr.mxu0 0.0
    %688 = vmatpush1.msra.mxu0 0.0
    %689 = vmatprep.subr.mxu0 0.0
    %690 = vmatpush1.msra.mxu0 0.0
    %691 = vmatprep.subr.mxu0 0.0
    %692 = vmatpush1.msra.mxu0 0.0
    %693 = vmatprep.subr.mxu0 0.0
    %694 = vmatpush1.msra.mxu0 0.0
    %695 = vmatprep.subr.mxu0 0.0
    %696 = vmatpush1.msra.mxu0 0.0
    %697 = vmatprep.subr.mxu0 0.0
    %698 = vmatpush1.msra.mxu0 0.0
    %699 = vmatprep.subr.mxu0 0.0
    %700 = vmatpush1.msra.mxu0 0.0
    %701 = vmatprep.subr.mxu0 0.0
    %702 = vmatpush1.msra.mxu0 0.0
    %703 = vmatprep.subr.mxu0 0.0
    %704 = vmatpush1.msra.mxu0 0.0
    %705 = vmatprep.subr.mxu0 0.0
    %706 = vmatpush1.msra.mxu0 0.0
    %707 = vmatprep.subr.mxu0 0.0
    %708 = vmatpush1.msra.mxu0 0.0
    %709 = vmatprep.subr.mxu0 0.0
    %710 = vmatpush1.msra.mxu0 0.0
    %711 = vmatprep.subr.mxu0 0.0
    %712 = vmatpush1.msra.mxu0 0.0
    %713 = vmatprep.subr.mxu0 0.0
    %714 = vmatpush1.msra.mxu0 0.0
    %715 = vmatprep.subr.mxu0 0.0
    %716 = vmatpush1.msra.mxu0 0.0
    %717 = vmatprep.subr.mxu0 0.0
    %718 = vmatpush1.msra.mxu0 0.0
    %719 = vmatprep.subr.mxu0 0.0
    %720 = vmatpush1.msra.mxu0 0.0
    %721 = vmatprep.subr.mxu0 0.0
    %722 = vmatpush1.msra.mxu0 0.0
    %723 = vmatprep.subr.mxu0 0.0
    %724 = vmatpush1.msra.mxu0 0.0
    %725 = vmatprep.subr.mxu0 0.0
    %726 = vmatpush1.msra.mxu0 0.0
    %727 = vmatprep.mubr.f32.mxu0 0.0
    %728 = vmatmul.mubr.f32.gmra.mrb[0].mxu0 %v661
    %v729 = vpop.f32.mrb[0].mxu0
    %v730 = vadd.f32 0.0, %v729
    %v731 = vpop.f32.mrb[0].mxu0
    %732 = vdwg.mxu0
    %v733 = vsub.f32 %v657, %v730
    %v734 = vmul.f32 %v211, %v733
    %v735 = vadd.f32 %v730, %v734
    %v736 = vadd.f32 %v735, %v586
    %v737 = vld [vmem:[#allocation5] sm:$0xff]
    %v738 = vld [vmem:[#allocation5 + $0x8] sm:$0xff]
    %v739 = vld [vmem:[#allocation5 + $0x10] sm:$0xff]
    %v740 = vld [vmem:[#allocation5 + $0x18] sm:$0xff]
    %v741 = vld [vmem:[#allocation5 + $0x20] sm:$0xff]
    %v742 = vld [vmem:[#allocation5 + $0x28] sm:$0xff]
    %v743 = vld [vmem:[#allocation5 + $0x30] sm:$0xff]
    %v744 = vld [vmem:[#allocation5 + $0x38] sm:$0xff]
    %v745 = vld [vmem:[#allocation5 + $0x40] sm:$0xff]
    %v746 = vld [vmem:[#allocation5 + $0x48] sm:$0xff]
    %v747 = vld [vmem:[#allocation5 + $0x50] sm:$0xff]
    %v748 = vld [vmem:[#allocation5 + $0x58] sm:$0xff]
    %v749 = vld [vmem:[#allocation5 + $0x60] sm:$0xff]
    %v750 = vld [vmem:[#allocation5 + $0x68] sm:$0xff]
    %v751 = vld [vmem:[#allocation5 + $0x70] sm:$0xff]
    %v752 = vld [vmem:[#allocation5 + $0x78] sm:$0xff]
    %v753 = vld [vmem:[#allocation5 + $0x2b8] sm:$0x1]
    %v754 = vld [vmem:[#allocation5 + $0x2c0] sm:$0x1]
    %755 = vmatprep.subr.mxu0 0.0
    %756 = vmatpush1.msra.mxu0 %v737
    %757 = vmatprep.subr.mxu0 0.0
    %758 = vmatpush1.msra.mxu0 %v738
    %759 = vmatprep.subr.mxu0 0.0
    %760 = vmatpush1.msra.mxu0 %v739
    %761 = vmatprep.subr.mxu0 0.0
    %762 = vmatpush1.msra.mxu0 %v740
    %763 = vmatprep.subr.mxu0 0.0
    %764 = vmatpush1.msra.mxu0 %v741
    %765 = vmatprep.subr.mxu0 0.0
    %766 = vmatpush1.msra.mxu0 %v742
    %767 = vmatprep.subr.mxu0 0.0
    %768 = vmatpush1.msra.mxu0 %v743
    %769 = vmatprep.subr.mxu0 0.0
    %770 = vmatpush1.msra.mxu0 %v744
    %771 = vmatprep.subr.mxu0 0.0
    %772 = vmatpush1.msra.mxu0 %v745
    %773 = vmatprep.subr.mxu0 0.0
    %774 = vmatpush1.msra.mxu0 %v746
    %775 = vmatprep.subr.mxu0 0.0
    %776 = vmatpush1.msra.mxu0 %v747
    %777 = vmatprep.subr.mxu0 0.0
    %778 = vmatpush1.msra.mxu0 %v748
    %779 = vmatprep.subr.mxu0 0.0
    %780 = vmatpush1.msra.mxu0 %v749
    %781 = vmatprep.subr.mxu0 0.0
    %782 = vmatpush1.msra.mxu0 %v750
    %783 = vmatprep.subr.mxu0 0.0
    %784 = vmatpush1.msra.mxu0 %v751
    %785 = vmatprep.subr.mxu0 0.0
    %786 = vmatpush1.msra.mxu0 %v752
    %787 = vmatprep.subr.mxu0 0.0
    %788 = vmatpush1.msra.mxu0 0.0
    %789 = vmatprep.subr.mxu0 0.0
    %790 = vmatpush1.msra.mxu0 0.0
    %791 = vmatprep.subr.mxu0 0.0
    %792 = vmatpush1.msra.mxu0 0.0
    %793 = vmatprep.subr.mxu0 0.0
    %794 = vmatpush1.msra.mxu0 0.0
    %795 = vmatprep.subr.mxu0 0.0
    %796 = vmatpush1.msra.mxu0 0.0
    %797 = vmatprep.subr.mxu0 0.0
    %798 = vmatpush1.msra.mxu0 0.0
    %799 = vmatprep.subr.mxu0 0.0
    %800 = vmatpush1.msra.mxu0 0.0
    %801 = vmatprep.subr.mxu0 0.0
    %802 = vmatpush1.msra.mxu0 0.0
    %803 = vmatprep.subr.mxu0 0.0
    %804 = vmatpush1.msra.mxu0 0.0
    %805 = vmatprep.subr.mxu0 0.0
    %806 = vmatpush1.msra.mxu0 0.0
    %807 = vmatprep.subr.mxu0 0.0
    %808 = vmatpush1.msra.mxu0 0.0
    %809 = vmatprep.subr.mxu0 0.0
    %810 = vmatpush1.msra.mxu0 0.0
    %811 = vmatprep.subr.mxu0 0.0
    %812 = vmatpush1.msra.mxu0 0.0
    %813 = vmatprep.subr.mxu0 0.0
    %814 = vmatpush1.msra.mxu0 0.0
    %815 = vmatprep.subr.mxu0 0.0
    %816 = vmatpush1.msra.mxu0 0.0
    %817 = vmatprep.subr.mxu0 0.0
    %818 = vmatpush1.msra.mxu0 0.0
    %819 = vmatprep.mubr.f32.mxu0 0.0
    %820 = vmatmul.mubr.f32.gmra.mrb[0].mxu0 %v736
    %v821 = vpop.f32.mrb[0].mxu0
    %v822 = vadd.f32 0.0, %v821
    %v823 = vpop.f32.mrb[0].mxu0
    %824 = vdwg.mxu0
    %v825 = vmul.f32 %v822, 0.03125
    %v826 = vsub.f32 %v736, %v825
    %v827 = vmul.f32 %v826, %v826
    %828 = vmatprep.subr.mxu0 0.0
    %829 = vmatpush1.msra.mxu0 %v737
    %830 = vmatprep.subr.mxu0 0.0
    %831 = vmatpush1.msra.mxu0 %v738
    %832 = vmatprep.subr.mxu0 0.0
    %833 = vmatpush1.msra.mxu0 %v739
    %834 = vmatprep.subr.mxu0 0.0
    %835 = vmatpush1.msra.mxu0 %v740
    %836 = vmatprep.subr.mxu0 0.0
    %837 = vmatpush1.msra.mxu0 %v741
    %838 = vmatprep.subr.mxu0 0.0
    %839 = vmatpush1.msra.mxu0 %v742
    %840 = vmatprep.subr.mxu0 0.0
    %841 = vmatpush1.msra.mxu0 %v743
    %842 = vmatprep.subr.mxu0 0.0
    %843 = vmatpush1.msra.mxu0 %v744
    %844 = vmatprep.subr.mxu0 0.0
    %845 = vmatpush1.msra.mxu0 %v745
    %846 = vmatprep.subr.mxu0 0.0
    %847 = vmatpush1.msra.mxu0 %v746
    %848 = vmatprep.subr.mxu0 0.0
    %849 = vmatpush1.msra.mxu0 %v747
    %850 = vmatprep.subr.mxu0 0.0
    %851 = vmatpush1.msra.mxu0 %v748
    %852 = vmatprep.subr.mxu0 0.0
    %853 = vmatpush1.msra.mxu0 %v749
    %854 = vmatprep.subr.mxu0 0.0
    %855 = vmatpush1.msra.mxu0 %v750
    %856 = vmatprep.subr.mxu0 0.0
    %857 = vmatpush1.msra.mxu0 %v751
    %858 = vmatprep.subr.mxu0 0.0
    %859 = vmatpush1.msra.mxu0 %v752
    %860 = vmatprep.subr.mxu0 0.0
    %861 = vmatpush1.msra.mxu0 0.0
    %862 = vmatprep.subr.mxu0 0.0
    %863 = vmatpush1.msra.mxu0 0.0
    %864 = vmatprep.subr.mxu0 0.0
    %865 = vmatpush1.msra.mxu0 0.0
    %866 = vmatprep.subr.mxu0 0.0
    %867 = vmatpush1.msra.mxu0 0.0
    %868 = vmatprep.subr.mxu0 0.0
    %869 = vmatpush1.msra.mxu0 0.0
    %870 = vmatprep.subr.mxu0 0.0
    %871 = vmatpush1.msra.mxu0 0.0
    %872 = vmatprep.subr.mxu0 0.0
    %873 = vmatpush1.msra.mxu0 0.0
    %874 = vmatprep.subr.mxu0 0.0
    %875 = vmatpush1.msra.mxu0 0.0
    %876 = vmatprep.subr.mxu0 0.0
    %877 = vmatpush1.msra.mxu0 0.0
    %878 = vmatprep.subr.mxu0 0.0
    %879 = vmatpush1.msra.mxu0 0.0
    %880 = vmatprep.subr.mxu0 0.0
    %881 = vmatpush1.msra.mxu0 0.0
    %882 = vmatprep.subr.mxu0 0.0
    %883 = vmatpush1.msra.mxu0 0.0
    %884 = vmatprep.subr.mxu0 0.0
    %885 = vmatpush1.msra.mxu0 0.0
    %886 = vmatprep.subr.mxu0 0.0
    %887 = vmatpush1.msra.mxu0 0.0
    %888 = vmatprep.subr.mxu0 0.0
    %889 = vmatpush1.msra.mxu0 0.0
    %890 = vmatprep.subr.mxu0 0.0
    %891 = vmatpush1.msra.mxu0 0.0
    %892 = vmatprep.mubr.f32.mxu0 0.0
    %893 = vmatmul.mubr.f32.gmra.mrb[0].mxu0 %v827
    %v894 = vpop.f32.mrb[0].mxu0
    %v895 = vadd.f32 0.0, %v894
    %v896 = vpop.f32.mrb[0].mxu0
    %897 = vdwg.mxu0
    %v898 = vmul.f32 %v895, 0.032258064
    %v899 = vrsqrt.pop %v898
    %v900 = vmul.f32 %v898, %v899
    %vm901 = vcmp.eq.f32.partialorder %v898, inf
    %v902 = vsel %vm901, %v898, %v900
    %vm903 = vcmp.eq.f32.partialorder %v898, 0.0
    %v904 = vand.u32 %v898, 2147483648
    %v905 = vsel %vm903, %v904, %v902
    %v906 = vadd.f32 %v905, 1e-06
    %v907 = vrcp.pop %v906
    %v908 = vlaneseq
    %v909 = vshrl.u32 %v908, 7
    %v910 = vsub.s32 0, %v909
    %v911 = vrot.slane %v753, %v910
    %v912 = vmul.f32 %v911, %v826
    %v913 = vmul.f32 %v912, %v907
    %v914 = vlaneseq
    %v915 = vshrl.u32 %v914, 7
    %v916 = vsub.s32 0, %v915
    %v917 = vrot.slane %v754, %v916
    %v918 = vadd.f32 %v913, %v917
    %v919 = vld [vmem:[#allocation5 + $0x1b0] sm:$0xff]
    %v920 = vld [vmem:[#allocation5 + $0x1b8] sm:$0xff]
    %v921 = vld [vmem:[#allocation5 + $0x1c0] sm:$0xff]
    %v922 = vld [vmem:[#allocation5 + $0x1c8] sm:$0xff]
    %v923 = vld [vmem:[#allocation5 + $0x1d0] sm:$0xff]
    %v924 = vld [vmem:[#allocation5 + $0x1d8] sm:$0xff]
    %v925 = vld [vmem:[#allocation5 + $0x1e0] sm:$0xff]
    %v926 = vld [vmem:[#allocation5 + $0x1e8] sm:$0xff]
    %v927 = vld [vmem:[#allocation5 + $0x1f0] sm:$0xff]
    %v928 = vld [vmem:[#allocation5 + $0x1f8] sm:$0xff]
    %v929 = vld [vmem:[#allocation5 + $0x200] sm:$0xff]
    %v930 = vld [vmem:[#allocation5 + $0x208] sm:$0xff]
    %v931 = vld [vmem:[#allocation5 + $0x210] sm:$0xff]
    %v932 = vld [vmem:[#allocation5 + $0x218] sm:$0xff]
    %v933 = vld [vmem:[#allocation5 + $0x220] sm:$0xff]
    %v934 = vld [vmem:[#allocation5 + $0x228] sm:$0xff]
    %v935 = vld [vmem:[#allocation5 + $0x2c8] sm:$0x1]
    %v936 = vlaneseq
    %v937 = vshrl.u32 %v936, 7
    %v938 = vsub.s32 0, %v937
    %v939 = vrot.slane %v935, %v938
    %940 = vmatprep.subr.mxu0 0.0
    %941 = vmatpush1.msra.mxu0 %v919
    %942 = vmatprep.subr.mxu0 0.0
    %943 = vmatpush1.msra.mxu0 %v920
    %944 = vmatprep.subr.mxu0 0.0
    %945 = vmatpush1.msra.mxu0 %v921
    %946 = vmatprep.subr.mxu0 0.0
    %947 = vmatpush1.msra.mxu0 %v922
    %948 = vmatprep.subr.mxu0 0.0
    %949 = vmatpush1.msra.mxu0 %v923
    %950 = vmatprep.subr.mxu0 0.0
    %951 = vmatpush1.msra.mxu0 %v924
    %952 = vmatprep.subr.mxu0 0.0
    %953 = vmatpush1.msra.mxu0 %v925
    %954 = vmatprep.subr.mxu0 0.0
    %955 = vmatpush1.msra.mxu0 %v926
    %956 = vmatprep.subr.mxu0 0.0
    %957 = vmatpush1.msra.mxu0 %v927
    %958 = vmatprep.subr.mxu0 0.0
    %959 = vmatpush1.msra.mxu0 %v928
    %960 = vmatprep.subr.mxu0 0.0
    %961 = vmatpush1.msra.mxu0 %v929
    %962 = vmatprep.subr.mxu0 0.0
    %963 = vmatpush1.msra.mxu0 %v930
    %964 = vmatprep.subr.mxu0 0.0
    %965 = vmatpush1.msra.mxu0 %v931
    %966 = vmatprep.subr.mxu0 0.0
    %967 = vmatpush1.msra.mxu0 %v932
    %968 = vmatprep.subr.mxu0 0.0
    %969 = vmatpush1.msra.mxu0 %v933
    %970 = vmatprep.subr.mxu0 0.0
    %971 = vmatpush1.msra.mxu0 %v934
    %972 = vmatprep.subr.mxu0 0.0
    %973 = vmatpush1.msra.mxu0 0.0
    %974 = vmatprep.subr.mxu0 0.0
    %975 = vmatpush1.msra.mxu0 0.0
    %976 = vmatprep.subr.mxu0 0.0
    %977 = vmatpush1.msra.mxu0 0.0
    %978 = vmatprep.subr.mxu0 0.0
    %979 = vmatpush1.msra.mxu0 0.0
    %980 = vmatprep.subr.mxu0 0.0
    %981 = vmatpush1.msra.mxu0 0.0
    %982 = vmatprep.subr.mxu0 0.0
    %983 = vmatpush1.msra.mxu0 0.0
    %984 = vmatprep.subr.mxu0 0.0
    %985 = vmatpush1.msra.mxu0 0.0
    %986 = vmatprep.subr.mxu0 0.0
    %987 = vmatpush1.msra.mxu0 0.0
    %988 = vmatprep.subr.mxu0 0.0
    %989 = vmatpush1.msra.mxu0 0.0
    %990 = vmatprep.subr.mxu0 0.0
    %991 = vmatpush1.msra.mxu0 0.0
    %992 = vmatprep.subr.mxu0 0.0
    %993 = vmatpush1.msra.mxu0 0.0
    %994 = vmatprep.subr.mxu0 0.0
    %995 = vmatpush1.msra.mxu0 0.0
    %996 = vmatprep.subr.mxu0 0.0
    %997 = vmatpush1.msra.mxu0 0.0
    %998 = vmatprep.subr.mxu0 0.0
    %999 = vmatpush1.msra.mxu0 0.0
    %1000 = vmatprep.subr.mxu0 0.0
    %1001 = vmatpush1.msra.mxu0 0.0
    %1002 = vmatprep.subr.mxu0 0.0
    %1003 = vmatpush1.msra.mxu0 0.0
    %1004 = vmatprep.mubr.f32.mxu0 0.0
    %1005 = vmatmul.mubr.f32.gmra.mrb[0].mxu0 %v918
    %v1006 = vpop.f32.mrb[0].mxu0
    %v1007 = vadd.f32 %v939, %v1006
    %v1008 = vpop.f32.mrb[0].mxu0
    %1009 = vdwg.mxu0
    %v1010 = vmax.f32 %v1007, 0.0
    %v1011 = vld [vmem:[#allocation5 + $0x230] sm:$0xff]
    %v1012 = vld [vmem:[#allocation5 + $0x238] sm:$0xff]
    %v1013 = vld [vmem:[#allocation5 + $0x240] sm:$0xff]
    %v1014 = vld [vmem:[#allocation5 + $0x248] sm:$0xff]
    %v1015 = vld [vmem:[#allocation5 + $0x250] sm:$0xff]
    %v1016 = vld [vmem:[#allocation5 + $0x258] sm:$0xff]
    %v1017 = vld [vmem:[#allocation5 + $0x260] sm:$0xff]
    %v1018 = vld [vmem:[#allocation5 + $0x268] sm:$0xff]
    %v1019 = vld [vmem:[#allocation5 + $0x270] sm:$0xff]
    %v1020 = vld [vmem:[#allocation5 + $0x278] sm:$0xff]
    %v1021 = vld [vmem:[#allocation5 + $0x280] sm:$0xff]
    %v1022 = vld [vmem:[#allocation5 + $0x288] sm:$0xff]
    %v1023 = vld [vmem:[#allocation5 + $0x290] sm:$0xff]
    %v1024 = vld [vmem:[#allocation5 + $0x298] sm:$0xff]
    %v1025 = vld [vmem:[#allocation5 + $0x2a0] sm:$0xff]
    %v1026 = vld [vmem:[#allocation5 + $0x2a8] sm:$0xff]
    %v1027 = vld [vmem:[#allocation5 + $0x2d0] sm:$0x1]
    %v1028 = vlaneseq
    %v1029 = vshrl.u32 %v1028, 7
    %v1030 = vsub.s32 0, %v1029
    %v1031 = vrot.slane %v1027, %v1030
    %1032 = vmatprep.subr.mxu0 0.0
    %1033 = vmatpush1.msra.mxu0 %v1011
    %1034 = vmatprep.subr.mxu0 0.0
    %1035 = vmatpush1.msra.mxu0 %v1012
    %1036 = vmatprep.subr.mxu0 0.0
    %1037 = vmatpush1.msra.mxu0 %v1013
    %1038 = vmatprep.subr.mxu0 0.0
    %1039 = vmatpush1.msra.mxu0 %v1014
    %1040 = vmatprep.subr.mxu0 0.0
    %1041 = vmatpush1.msra.mxu0 %v1015
    %1042 = vmatprep.subr.mxu0 0.0
    %1043 = vmatpush1.msra.mxu0 %v1016
    %1044 = vmatprep.subr.mxu0 0.0
    %1045 = vmatpush1.msra.mxu0 %v1017
    %1046 = vmatprep.subr.mxu0 0.0
    %1047 = vmatpush1.msra.mxu0 %v1018
    %1048 = vmatprep.subr.mxu0 0.0
    %1049 = vmatpush1.msra.mxu0 %v1019
    %1050 = vmatprep.subr.mxu0 0.0
    %1051 = vmatpush1.msra.mxu0 %v1020
    %1052 = vmatprep.subr.mxu0 0.0
    %1053 = vmatpush1.msra.mxu0 %v1021
    %1054 = vmatprep.subr.mxu0 0.0
    %1055 = vmatpush1.msra.mxu0 %v1022
    %1056 = vmatprep.subr.mxu0 0.0
    %1057 = vmatpush1.msra.mxu0 %v1023
    %1058 = vmatprep.subr.mxu0 0.0
    %1059 = vmatpush1.msra.mxu0 %v1024
    %1060 = vmatprep.subr.mxu0 0.0
    %1061 = vmatpush1.msra.mxu0 %v1025
    %1062 = vmatprep.subr.mxu0 0.0
    %1063 = vmatpush1.msra.mxu0 %v1026
    %1064 = vmatprep.subr.mxu0 0.0
    %1065 = vmatpush1.msra.mxu0 0.0
    %1066 = vmatprep.subr.mxu0 0.0
    %1067 = vmatpush1.msra.mxu0 0.0
    %1068 = vmatprep.subr.mxu0 0.0
    %1069 = vmatpush1.msra.mxu0 0.0
    %1070 = vmatprep.subr.mxu0 0.0
    %1071 = vmatpush1.msra.mxu0 0.0
    %1072 = vmatprep.subr.mxu0 0.0
    %1073 = vmatpush1.msra.mxu0 0.0
    %1074 = vmatprep.subr.mxu0 0.0
    %1075 = vmatpush1.msra.mxu0 0.0
    %1076 = vmatprep.subr.mxu0 0.0
    %1077 = vmatpush1.msra.mxu0 0.0
    %1078 = vmatprep.subr.mxu0 0.0
    %1079 = vmatpush1.msra.mxu0 0.0
    %1080 = vmatprep.subr.mxu0 0.0
    %1081 = vmatpush1.msra.mxu0 0.0
    %1082 = vmatprep.subr.mxu0 0.0
    %1083 = vmatpush1.msra.mxu0 0.0
    %1084 = vmatprep.subr.mxu0 0.0
    %1085 = vmatpush1.msra.mxu0 0.0
    %1086 = vmatprep.subr.mxu0 0.0
    %1087 = vmatpush1.msra.mxu0 0.0
    %1088 = vmatprep.subr.mxu0 0.0
    %1089 = vmatpush1.msra.mxu0 0.0
    %1090 = vmatprep.subr.mxu0 0.0
    %1091 = vmatpush1.msra.mxu0 0.0
    %1092 = vmatprep.subr.mxu0 0.0
    %1093 = vmatpush1.msra.mxu0 0.0
    %1094 = vmatprep.subr.mxu0 0.0
    %1095 = vmatpush1.msra.mxu0 0.0
    %1096 = vmatprep.mubr.f32.mxu0 0.0
    %1097 = vmatmul.mubr.f32.gmra.mrb[0].mxu0 %v1010
    %v1098 = vpop.f32.mrb[0].mxu0
    %v1099 = vadd.f32 %v1031, %v1098
    %v1100 = vpop.f32.mrb[0].mxu0
    %1101 = vdwg.mxu0
    %v1102 = vadd.f32 %v736, %v1099
    %1103 = vst [vmem:[#allocation8 + $0x8] sm:$0xff] %v1102
    // Predicated region
    $region26: #{tpu_custom_call.1} parent=1 // pred_check
      _
    $region27: #{tpu_custom_call.1} parent=1 // pred_check_branch
      %1105 = sbr.rel (0) target = $region29
    $region28: #{tpu_custom_call.1} parent=1 // pred_region
      %s1107 = ssub.s32 256, 256
      %1108 = vsyncadd [#allocation4], %s1107
      %s1109 = sshll.u32 [#allocation8], 4
      %s1110 = int_to_ptr.vmem [resolvable:$true] %s1109
      %1115 = dma.vmem_to_hbm [thread:$0]  %s1110, 256, %s3, [#allocation4], 128, 128, 8
    $region29: #{tpu_custom_call.1} parent=1 // pred_fallthru
      _
    // Predicated region
    $region30: #{tpu_custom_call.1} parent=1 // pred_check
      _
    $region31: #{tpu_custom_call.1} parent=1 // pred_check_branch
      %1117 = sbr.rel (0) target = $region33
    $region32: #{tpu_custom_call.1} parent=1 // pred_region
      %1118 = dma.done [#allocation4], 256
    $region33: #{tpu_custom_call.1} parent=1 // pred_fallthru
      _
    %1119 = vsyncpa [#allocation3], 1
    %1120 = vsyncpa [#allocation6], 1
    %1121 = vsyncpa [#allocation4], 1

</llo_original>
